<compile_context>
chip_gen: v5e
topology: v5e:2x2
jax: 0.10.0
libtpu: 0.0.40
codegen_flags: <defaults>
</compile_context>

<pallas_src>
import functools

import jax
import jax.numpy as jnp
import numpy as np
from jax import lax
from jax.experimental import pallas as pl
from jax.experimental.pallas import tpu as pltpu


# ----------------------------------------------------------------------------
# Fused kernel: one grid step = Bt batch elements, whole conv stack + pool.
# ----------------------------------------------------------------------------
def _encoder_block_kernel(x_ref, r_ref, ep_ref, ph_ref, xo_ref, po_ref,
                          pad_ref, *, img_h):
    MT, WCu = x_ref.shape                  # MT = Bt * H rows, lane-dense W*Cu
    n_conv = r_ref.shape[0]
    bt = MT // img_h                       # batch elements stacked in this slab

    # Zero the haloed scratch once; only rows 8..MT+7 are ever rewritten, so
    # the zero halo rows (7 and MT+8) provide the vertical "same" padding.
    pad_ref[...] = jnp.zeros((MT + 16, WCu), jnp.float32)

    a = x_ref[...].astype(jnp.float32)     # (MT, W*Cu) activation slab

    if bt > 1:
        # Rows at internal image boundaries must not see the neighbouring
        # image through the vertical shift; mask them (hoisted out of the
        # layer loop).
        row = lax.broadcasted_iota(jnp.int32, (MT, 1), 0)
        top_row = (row % img_h) == 0
        bot_row = (row % img_h) == (img_h - 1)

    for layer in range(n_conv):            # unrolled at trace time
        # Vertically shifted copies via the zero-haloed scratch:
        #   pad[8+i] = a[i];  a_dn[h] = pad[7+h] = a[h-1];  a_up[h] = a[h+1].
        pad_ref[pl.ds(8, MT), :] = a       # aligned sublane store
        a_dn = pad_ref[pl.ds(7, MT), :]
        a_up = pad_ref[pl.ds(9, MT), :]
        if bt > 1:
            a_dn = jnp.where(top_row, 0.0, a_dn)
            a_up = jnp.where(bot_row, 0.0, a_up)

        # Single fused K = 3*W*Cu contraction per layer (all 9 taps + the
        # horizontal padding are folded into the Toeplitz weight), bf16
        # operands with f32 accumulation on the MXU.
        a3 = jnp.concatenate([a_dn, a, a_up], axis=1).astype(jnp.bfloat16)
        acc = jnp.dot(a3, r_ref[layer], preferred_element_type=jnp.float32)

        ep = ep_ref[layer]                 # (3, W*Cu) f32: bias / scale / shift
        y = acc + ep[0:1, :]               # conv bias
        y = jnp.where(y > 0, y, 0.01 * y)  # LeakyReLU(negative_slope=0.01)
        a = y * ep[1:2, :] + ep[2:3, :]    # BatchNorm2d (eval, folded)
        # Dropout2d(0.25): identity in eval mode.

    xo_ref[...] = a.astype(xo_ref.dtype)   # lane-dense (MT, W*Cu) store

    # Fused AvgPool2d((2, 2)): vertical pair-sum via a strided ref read
    # (no MXU), horizontal pair-sum as one small bf16 matmul.
    ev = xo_ref[pl.ds(0, MT // 2, 2), :]
    od = xo_ref[pl.ds(1, MT // 2, 2), :]
    vs = (ev + od).astype(jnp.bfloat16)
    pooled = jnp.dot(vs, ph_ref[...], preferred_element_type=jnp.float32)
    po_ref[...] = (0.25 * pooled).astype(po_ref.dtype)


# ----------------------------------------------------------------------------
# One-time parameter packing (hoisted out of the per-call jitted forward).
# ----------------------------------------------------------------------------
def pack_encoder_params(layers, H, W, in_channels):
    """Expand conv weights into lane-dense Toeplitz matrices + folded BN rows.

    Returns (r_all bf16 (n_conv, 3*W*Cu, W*Cu), ep_all f32 (n_conv, 3, W*Cu),
    ph bf16 (W*Cu, (W/2)*Cu), out_channels)."""
    Cout = layers[0]["w"].shape[-1]
    Cu = max(in_channels, Cout)            # uniform lane-packed channel width
    WCu = W * Cu

    # T[dx, p, q] = 1 iff input col p feeds output col q through horizontal
    # tap dx (p == q + dx - 1); folds horizontal "same" padding into R.
    cols = np.arange(W)
    T = jnp.asarray(np.stack(
        [(cols[:, None] == cols[None, :] + dx - 1).astype(np.float32)
         for dx in range(3)], axis=0))                       # (3, W, W)

    r_list, ep_list = [], []
    for layer in layers:
        w = layer["w"].astype(jnp.float32)
        cin_l = w.shape[2]
        wpad = jnp.zeros((3, 3, Cu, Cu), jnp.float32)
        wpad = wpad.at[:, :, :cin_l, :Cout].set(w)
        # R[dy*WCu + p*Cu+ci, q*Cu+co] = w[dy, p-q+1, ci, co] (0 outside taps)
        R = jnp.einsum("xpq,yxio->ypiqo", T, wpad).reshape(3 * WCu, WCu)
        r_list.append(R)

        def _row(v):                       # (1, Cout) -> lane-packed (W*Cu,)
            return jnp.tile(jnp.pad(v[0].astype(jnp.float32),
                                    (0, Cu - Cout)), W)
        ep_list.append(jnp.stack([_row(layer["b"]), _row(layer["scale"]),
                                  _row(layer["shift"])], axis=0))

    r_all = jnp.stack(r_list, axis=0).astype(jnp.bfloat16)   # (n, 3*WCu, WCu)
    ep_all = jnp.stack(ep_list, axis=0)                      # (n, 3, WCu) f32

    # Horizontal pool pair-sum that preserves the lane-packed channel layout.
    pw = (np.arange(W)[:, None] // 2 ==
          np.arange(W // 2)[None, :]).astype(np.float32)
    ph = jnp.asarray(np.kron(pw, np.eye(Cu, dtype=np.float32))
                     ).astype(jnp.bfloat16)                  # (WCu, (W/2)*Cu)
    return r_all, ep_all, ph, Cout


# ----------------------------------------------------------------------------
# Wrapper: lane packing + one fused pallas_call over batched grid steps.
# ----------------------------------------------------------------------------
@functools.partial(jax.jit, static_argnames=("out_channels",))
def encoder_block_forward(x, r_all, ep_all, ph, *, out_channels):
    """x: (B, H, W, Cin) NHWC.  Returns (x_out NHWC, pooled NHWC)."""
    B, H, W, Cin = x.shape
    n_conv = r_all.shape[0]
    WCu = r_all.shape[2]
    Cu = WCu // W
    WC2 = (W // 2) * Cu

    # Bt batch elements per grid step: target M = Bt*H ~ 256 MXU rows, but
    # keep >= 2 grid steps when B >= 2 so both v7x TensorCores get work.
    bt = max(1, 256 // H)
    bt = min(bt, B)
    if B >= 2:
        bt = min(bt, -(-B // 2))
    Bp = -(-B // bt) * bt                  # batch padded to a multiple of Bt
    steps = Bp // bt
    MT = bt * H

    xp = x
    if Cin < Cu:
        xp = jnp.pad(xp, ((0, 0), (0, 0), (0, 0), (0, Cu - Cin)))
    if Bp != B:
        xp = jnp.pad(xp, ((0, Bp - B), (0, 0), (0, 0), (0, 0)))
    xp = xp.reshape(Bp * H, WCu)           # lane-dense slab, free reshape

    kernel = functools.partial(_encoder_block_kernel, img_h=H)

    # VMEM at the test size: R bf16 ~0.2 MiB (x2 buffered), slabs ~8 KiB.
    # (Grid-invariant operands never re-fetch; pl.Buffered(1) / a block-banded
    #  R layout would be the next step for very large W*Cu on v7x.)
    x_pk, p_pk = pl.pallas_call(
        kernel,
        out_shape=(jax.ShapeDtypeStruct((Bp * H, WCu), x.dtype),
                   jax.ShapeDtypeStruct((Bp * (H // 2), WC2), x.dtype)),
        grid_spec=pltpu.PrefetchScalarGridSpec(
            num_scalar_prefetch=0,
            grid=(steps,),
            in_specs=[
                pl.BlockSpec((MT, WCu), lambda b: (b, 0)),
                pl.BlockSpec((n_conv, 3 * WCu, WCu), lambda b: (0, 0, 0)),
                pl.BlockSpec((n_conv, 3, WCu), lambda b: (0, 0, 0)),
                pl.BlockSpec((WCu, WC2), lambda b: (0, 0)),
            ],
            out_specs=(
                pl.BlockSpec((MT, WCu), lambda b: (b, 0)),
                pl.BlockSpec((MT // 2, WC2), lambda b: (b, 0)),
            ),
            scratch_shapes=[pltpu.VMEM((MT + 16, WCu), jnp.float32)],
        ),
        compiler_params=pltpu.CompilerParams(
            dimension_semantics=("parallel",)),
    )(xp, r_all, ep_all, ph)

    # Free row-major unpack back to NHWC; channel slice is a no-op if Cu==Cout.
    x_out = x_pk.reshape(Bp, H, W, Cu)[:B, ..., :out_channels]
    p_out = p_pk.reshape(Bp, H // 2, W // 2, Cu)[:B, ..., :out_channels]
    return x_out, p_out


# ----------------------------------------------------------------------------
# Parameter init and pure-JAX reference (for verification).
# ----------------------------------------------------------------------------
def init_params(key, in_channels, out_channels, n_conv):
    layers = []
    cin = in_channels
    for _ in range(n_conv):
        key, k1, k2, k3, k4, k5, k6 = jax.random.split(key, 7)
        w = 0.1 * jax.random.normal(k1, (3, 3, cin, out_channels), jnp.float32)
        b = 0.1 * jax.random.normal(k2, (1, out_channels), jnp.float32)
        gamma = 1.0 + 0.1 * jax.random.normal(k3, (1, out_channels), jnp.float32)
        beta = 0.1 * jax.random.normal(k4, (1, out_channels), jnp.float32)
        rmean = 0.1 * jax.random.normal(k5, (1, out_channels), jnp.float32)
        rvar = 1.0 + 0.1 * jnp.abs(jax.random.normal(k6, (1, out_channels),
                                                     jnp.float32))
        scale = gamma / jnp.sqrt(rvar + 1e-5)       # BatchNorm eps = 1e-5
        shift = beta - rmean * scale
        layers.append(dict(w=w, b=b, scale=scale, shift=shift))
        cin = out_channels
    return layers


def reference_forward(x, layers):
    y = x
    for layer in layers:
        y = lax.conv_general_dilated(
            y, layer["w"], window_strides=(1, 1), padding="SAME",
            dimension_numbers=("NHWC", "HWIO", "NHWC"),
            precision=lax.Precision.HIGHEST)
        y = y + layer["b"][0]
        y = jnp.where(y > 0, y, 0.01 * y)
        y = y * layer["scale"][0] + layer["shift"][0]
    B, H, W, C = y.shape
    p = y.reshape(B, H // 2, 2, W // 2, 2, C).mean(axis=(2, 4))
    return y, p


if __name__ == "__main__":
    B, Cin, Cout, H, W, n_conv = 2, 4, 8, 16, 16, 2

    key = jax.random.PRNGKey(0)
    key, xkey = jax.random.split(key)
    # NHWC input (equivalent to a PyTorch NCHW tensor of shape [2, 4, 16, 16]).
    x = jax.random.normal(xkey, (B, H, W, Cin), jnp.float32)
    layers = init_params(key, Cin, Cout, n_conv)

    # One-time weight expansion (hoisted out of the jitted forward).
    r_all, ep_all, ph, out_ch = pack_encoder_params(layers, H, W, Cin)

    x_out, p_out = encoder_block_forward(x, r_all, ep_all, ph,
                                         out_channels=out_ch)
    x_out = jax.block_until_ready(x_out)
    p_out = jax.block_until_ready(p_out)

    x_ref, p_ref = reference_forward(x, layers)
    # bf16 MXU operands (per perf review) vs. an f32 HIGHEST reference:
    # relative error ~1e-2 worst case over two stacked conv layers.
    np.testing.assert_allclose(np.asarray(x_out), np.asarray(x_ref),
                               rtol=2e-2, atol=2e-2)
    np.testing.assert_allclose(np.asarray(p_out), np.asarray(p_ref),
                               rtol=2e-2, atol=2e-2)

    assert x_out.shape == (B, H, W, Cout)
    assert p_out.shape == (B, H // 2, W // 2, Cout)
    print("KERNEL_OK")
</pallas_src>

<mosaic_0001>
module attributes {stable_mosaic.version = 11 : i64} {
  func.func @_encoder_block_kernel(%arg0: i32, %arg1: memref<16x128xf32, #tpu.memory_space<vmem>>, %arg2: memref<2x384x128xbf16, #tpu.memory_space<vmem>>, %arg3: memref<2x3x128xf32, #tpu.memory_space<vmem>>, %arg4: memref<128x64xbf16, #tpu.memory_space<vmem>>, %arg5: memref<16x128xf32, #tpu.memory_space<vmem>>, %arg6: memref<8x64xf32, #tpu.memory_space<vmem>>, %arg7: memref<32x128xf32, #tpu.memory_space<vmem>>) attributes {dimension_semantics = [#tpu.dimension_semantics<parallel>], iteration_bounds = array<i64: 2>, scalar_prefetch = 0 : i64, scratch_operands = 1 : i64, tpu.core_type = #tpu.core_type<tc>, window_params = [{transform_indices = @transform_0, window_bounds = array<i64: 16, 128>}, {pipeline_mode = #tpu.pipeline_mode<synchronous>, transform_indices = @transform_1, window_bounds = array<i64: 2, 384, 128>}, {pipeline_mode = #tpu.pipeline_mode<synchronous>, transform_indices = @transform_2, window_bounds = array<i64: 2, 3, 128>}, {pipeline_mode = #tpu.pipeline_mode<synchronous>, transform_indices = @transform_3, window_bounds = array<i64: 128, 64>}, {transform_indices = @transform_4, window_bounds = array<i64: 16, 128>}, {transform_indices = @transform_5, window_bounds = array<i64: 8, 64>}]} {
    %cst = arith.constant 0.000000e+00 : f32
    %0 = vector.broadcast %cst : f32 to vector<32x128xf32>
    %c0 = arith.constant 0 : index
    %c0_0 = arith.constant 0 : index
    %1 = vector.load %arg7[%c0, %c0_0] : memref<32x128xf32, #tpu.memory_space<vmem>>, vector<32x128xf32>
    tpu.vector_store %arg7[%c0, %c0_0], %0 {strides = array<i32>} : memref<32x128xf32, #tpu.memory_space<vmem>>, vector<32x128xf32>,
    %c0_1 = arith.constant 0 : index
    %c0_2 = arith.constant 0 : index
    %2 = vector.load %arg1[%c0_1, %c0_2] : memref<16x128xf32, #tpu.memory_space<vmem>>, vector<16x128xf32>
    %c8 = arith.constant 8 : index
    %c0_3 = arith.constant 0 : index
    %3 = vector.load %arg7[%c8, %c0_3] : memref<32x128xf32, #tpu.memory_space<vmem>>, vector<16x128xf32>
    tpu.vector_store %arg7[%c8, %c0_3], %2 {strides = array<i32>} : memref<32x128xf32, #tpu.memory_space<vmem>>, vector<16x128xf32>,
    %c7 = arith.constant 7 : index
    %c0_4 = arith.constant 0 : index
    %4 = vector.load %arg7[%c7, %c0_4] : memref<32x128xf32, #tpu.memory_space<vmem>>, vector<16x128xf32>
    %c9 = arith.constant 9 : index
    %c0_5 = arith.constant 0 : index
    %5 = vector.load %arg7[%c9, %c0_5] : memref<32x128xf32, #tpu.memory_space<vmem>>, vector<16x128xf32>
    %6 = tpu.concatenate %4, %2, %5 in 1 : vector<16x128xf32>, vector<16x128xf32>, vector<16x128xf32> -> vector<16x384xf32>
    %7 = arith.truncf %6 : vector<16x384xf32> to vector<16x384xbf16>
    %c0_6 = arith.constant 0 : index
    %c0_7 = arith.constant 0 : index
    %c0_8 = arith.constant 0 : index
    %8 = vector.load %arg2[%c0_6, %c0_7, %c0_8] : memref<2x384x128xbf16, #tpu.memory_space<vmem>>, vector<1x384x128xbf16>
    %9 = vector.shape_cast %8 : vector<1x384x128xbf16> to vector<384x128xbf16>
    %cst_9 = arith.constant dense<0.000000e+00> : vector<16x128xf32>
    %10 = tpu.matmul %7, %9, %cst_9 {dimension_numbers = #tpu.dot_dimension_numbers<[1], [0], [0], [1], [0, 0, 1, 1], [], []>} : vector<16x384xbf16>, vector<384x128xbf16>, vector<16x128xf32> -> vector<16x128xf32>
    %c0_10 = arith.constant 0 : index
    %c0_11 = arith.constant 0 : index
    %c0_12 = arith.constant 0 : index
    %11 = vector.load %arg3[%c0_10, %c0_11, %c0_12] : memref<2x3x128xf32, #tpu.memory_space<vmem>>, vector<1x3x128xf32>
    %12 = vector.shape_cast %11 : vector<1x3x128xf32> to vector<3x128xf32>
    %13 = vector.extract_strided_slice %12 {offsets = [0, 0], sizes = [1, 128], strides = [1, 1]} : vector<3x128xf32> to vector<1x128xf32>
    %14 = vector.broadcast %13 : vector<1x128xf32> to vector<16x128xf32>
    %15 = arith.addf %10, %14 : vector<16x128xf32>
    %cst_13 = arith.constant 0.000000e+00 : f32
    %16 = vector.broadcast %cst_13 : f32 to vector<16x128xf32>
    %17 = arith.cmpf ogt, %15, %16 : vector<16x128xf32>
    %cst_14 = arith.constant 0.00999999977 : f32
    %18 = vector.broadcast %cst_14 : f32 to vector<16x128xf32>
    %19 = arith.mulf %18, %15 : vector<16x128xf32>
    %20 = arith.select %17, %15, %19 : vector<16x128xi1>, vector<16x128xf32>
    %21 = vector.extract_strided_slice %12 {offsets = [1, 0], sizes = [1, 128], strides = [1, 1]} : vector<3x128xf32> to vector<1x128xf32>
    %22 = vector.broadcast %21 : vector<1x128xf32> to vector<16x128xf32>
    %23 = arith.mulf %20, %22 : vector<16x128xf32>
    %24 = vector.extract_strided_slice %12 {offsets = [2, 0], sizes = [1, 128], strides = [1, 1]} : vector<3x128xf32> to vector<1x128xf32>
    %25 = vector.broadcast %24 : vector<1x128xf32> to vector<16x128xf32>
    %26 = arith.addf %23, %25 : vector<16x128xf32>
    %c8_15 = arith.constant 8 : index
    %c0_16 = arith.constant 0 : index
    %27 = vector.load %arg7[%c8_15, %c0_16] : memref<32x128xf32, #tpu.memory_space<vmem>>, vector<16x128xf32>
    tpu.vector_store %arg7[%c8_15, %c0_16], %26 {strides = array<i32>} : memref<32x128xf32, #tpu.memory_space<vmem>>, vector<16x128xf32>,
    %c7_17 = arith.constant 7 : index
    %c0_18 = arith.constant 0 : index
    %28 = vector.load %arg7[%c7_17, %c0_18] : memref<32x128xf32, #tpu.memory_space<vmem>>, vector<16x128xf32>
    %c9_19 = arith.constant 9 : index
    %c0_20 = arith.constant 0 : index
    %29 = vector.load %arg7[%c9_19, %c0_20] : memref<32x128xf32, #tpu.memory_space<vmem>>, vector<16x128xf32>
    %30 = tpu.concatenate %28, %26, %29 in 1 : vector<16x128xf32>, vector<16x128xf32>, vector<16x128xf32> -> vector<16x384xf32>
    %31 = arith.truncf %30 : vector<16x384xf32> to vector<16x384xbf16>
    %c1 = arith.constant 1 : index
    %c0_21 = arith.constant 0 : index
    %c0_22 = arith.constant 0 : index
    %32 = vector.load %arg2[%c1, %c0_21, %c0_22] : memref<2x384x128xbf16, #tpu.memory_space<vmem>>, vector<1x384x128xbf16>
    %33 = vector.shape_cast %32 : vector<1x384x128xbf16> to vector<384x128xbf16>
    %cst_23 = arith.constant dense<0.000000e+00> : vector<16x128xf32>
    %34 = tpu.matmul %31, %33, %cst_23 {dimension_numbers = #tpu.dot_dimension_numbers<[1], [0], [0], [1], [0, 0, 1, 1], [], []>} : vector<16x384xbf16>, vector<384x128xbf16>, vector<16x128xf32> -> vector<16x128xf32>
    %c1_24 = arith.constant 1 : index
    %c0_25 = arith.constant 0 : index
    %c0_26 = arith.constant 0 : index
    %35 = vector.load %arg3[%c1_24, %c0_25, %c0_26] : memref<2x3x128xf32, #tpu.memory_space<vmem>>, vector<1x3x128xf32>
    %36 = vector.shape_cast %35 : vector<1x3x128xf32> to vector<3x128xf32>
    %37 = vector.extract_strided_slice %36 {offsets = [0, 0], sizes = [1, 128], strides = [1, 1]} : vector<3x128xf32> to vector<1x128xf32>
    %38 = vector.broadcast %37 : vector<1x128xf32> to vector<16x128xf32>
    %39 = arith.addf %34, %38 : vector<16x128xf32>
    %cst_27 = arith.constant 0.000000e+00 : f32
    %40 = vector.broadcast %cst_27 : f32 to vector<16x128xf32>
    %41 = arith.cmpf ogt, %39, %40 : vector<16x128xf32>
    %cst_28 = arith.constant 0.00999999977 : f32
    %42 = vector.broadcast %cst_28 : f32 to vector<16x128xf32>
    %43 = arith.mulf %42, %39 : vector<16x128xf32>
    %44 = arith.select %41, %39, %43 : vector<16x128xi1>, vector<16x128xf32>
    %45 = vector.extract_strided_slice %36 {offsets = [1, 0], sizes = [1, 128], strides = [1, 1]} : vector<3x128xf32> to vector<1x128xf32>
    %46 = vector.broadcast %45 : vector<1x128xf32> to vector<16x128xf32>
    %47 = arith.mulf %44, %46 : vector<16x128xf32>
    %48 = vector.extract_strided_slice %36 {offsets = [2, 0], sizes = [1, 128], strides = [1, 1]} : vector<3x128xf32> to vector<1x128xf32>
    %49 = vector.broadcast %48 : vector<1x128xf32> to vector<16x128xf32>
    %50 = arith.addf %47, %49 : vector<16x128xf32>
    %c0_29 = arith.constant 0 : index
    %c0_30 = arith.constant 0 : index
    %51 = vector.load %arg5[%c0_29, %c0_30] : memref<16x128xf32, #tpu.memory_space<vmem>>, vector<16x128xf32>
    tpu.vector_store %arg5[%c0_29, %c0_30], %50 {strides = array<i32>} : memref<16x128xf32, #tpu.memory_space<vmem>>, vector<16x128xf32>,
    %c0_31 = arith.constant 0 : index
    %c0_32 = arith.constant 0 : index
    %52 = tpu.strided_load %arg5[%c0_31, %c0_32] {strides = array<i32: 2, 1>} : memref<16x128xf32, #tpu.memory_space<vmem>>, vector<8x128xf32>
    %c1_33 = arith.constant 1 : index
    %c0_34 = arith.constant 0 : index
    %53 = tpu.strided_load %arg5[%c1_33, %c0_34] {strides = array<i32: 2, 1>} : memref<16x128xf32, #tpu.memory_space<vmem>>, vector<8x128xf32>
    %54 = arith.addf %52, %53 : vector<8x128xf32>
    %55 = arith.truncf %54 : vector<8x128xf32> to vector<8x128xbf16>
    %c0_35 = arith.constant 0 : index
    %c0_36 = arith.constant 0 : index
    %56 = vector.load %arg4[%c0_35, %c0_36] : memref<128x64xbf16, #tpu.memory_space<vmem>>, vector<128x64xbf16>
    %cst_37 = arith.constant dense<0.000000e+00> : vector<8x64xf32>
    %57 = tpu.matmul %55, %56, %cst_37 {dimension_numbers = #tpu.dot_dimension_numbers<[1], [0], [0], [1], [0, 0, 1, 1], [], []>} : vector<8x128xbf16>, vector<128x64xbf16>, vector<8x64xf32> -> vector<8x64xf32>
    %cst_38 = arith.constant 2.500000e-01 : f32
    %58 = vector.broadcast %cst_38 : f32 to vector<8x64xf32>
    %59 = arith.mulf %58, %57 : vector<8x64xf32>
    %c0_39 = arith.constant 0 : index
    %c0_40 = arith.constant 0 : index
    %60 = vector.load %arg6[%c0_39, %c0_40] : memref<8x64xf32, #tpu.memory_space<vmem>>, vector<8x64xf32>
    tpu.vector_store %arg6[%c0_39, %c0_40], %59 {strides = array<i32>} : memref<8x64xf32, #tpu.memory_space<vmem>>, vector<8x64xf32>,
    return
  }
  func.func @transform_0(%arg0: i32) -> (i32, i32) {
    %c0_i32 = arith.constant 0 : i32
    %c0_i32_0 = arith.constant 0 : i32
    return %arg0, %c0_i32 : i32, i32
  }
  func.func @transform_1(%arg0: i32) -> (i32, i32, i32) {
    %c0_i32 = arith.constant 0 : i32
    %c0_i32_0 = arith.constant 0 : i32
    %c0_i32_1 = arith.constant 0 : i32
    %c0_i32_2 = arith.constant 0 : i32
    return %c0_i32, %c0_i32_0, %c0_i32_1 : i32, i32, i32
  }
  func.func @transform_2(%arg0: i32) -> (i32, i32, i32) {
    %c0_i32 = arith.constant 0 : i32
    %c0_i32_0 = arith.constant 0 : i32
    %c0_i32_1 = arith.constant 0 : i32
    %c0_i32_2 = arith.constant 0 : i32
    return %c0_i32, %c0_i32_0, %c0_i32_1 : i32, i32, i32
  }
  func.func @transform_3(%arg0: i32) -> (i32, i32) {
    %c0_i32 = arith.constant 0 : i32
    %c0_i32_0 = arith.constant 0 : i32
    %c0_i32_1 = arith.constant 0 : i32
    return %c0_i32, %c0_i32_0 : i32, i32
  }
  func.func @transform_4(%arg0: i32) -> (i32, i32) {
    %c0_i32 = arith.constant 0 : i32
    %c0_i32_0 = arith.constant 0 : i32
    return %arg0, %c0_i32 : i32, i32
  }
  func.func @transform_5(%arg0: i32) -> (i32, i32) {
    %c0_i32 = arith.constant 0 : i32
    %c0_i32_0 = arith.constant 0 : i32
    return %arg0, %c0_i32 : i32, i32
  }
}

</mosaic_0001>

<llo_original>
// kernel: encoder_block_forward.1
$region0: #{encoder_block_forward.1}
  #allocation0 [shape = 'u32[]', space=smem, size = 0x4, offset = 0x4, fixed_abs, tag = 'smem constant byte address 0x4 - core index']
  #allocation1 [shape = 'u32[72,128]{1,0:T(1,128)}', space=vmem, size = 0x9000, scoped, tag = 'internal scratch']
  #allocation2 [shape = 'f32[32,128]{1,0:T(8,128)}', space=vmem, size = 0x4000, scoped, tag = 'scratch operand']
  %s0 = inlined_call_operand.vmem [shape: f32[32,128], index: 0, kind: input, shape index: {}]
  %s1 = inlined_call_operand.vmem [shape: bf16[2,384,128], index: 1, kind: input, shape index: {}]
  %s2 = inlined_call_operand.vmem [shape: f32[2,3,128], index: 2, kind: input, shape index: {}]
  %s3 = inlined_call_operand.vmem [shape: bf16[128,64], index: 3, kind: input, shape index: {}]
  %s4 = inlined_call_operand.vmem [shape: f32[32,128], index: 4, kind: output, shape index: {0}]
  %s5 = inlined_call_operand.vmem [shape: f32[16,64], index: 5, kind: output, shape index: {1}]
  %6 = xla_tuple %s4, %s5
  %s7 = sld [smem:[#allocation0]]
  $region57: #{encoder_block_forward.1} parent=0
    _
  %s9 = ssub.s32 1, %s7
  %s10 = scalar_select 0, %s9, %s7
  loop: start=0, step=1, limit=4
  $region2: #{encoder_block_forward.1} parent=0 // loop_pre_header
    _
  $region3: #{encoder_block_forward.1} parent=0 // loop_header
    %s12 = sphi 0, %s16
    %p13 = scmp.ge.s32.totalorder %s12, 4
    %s22 = sphi 0, %s24
    %s25 = sphi 0, %s22
    %s26 = sphi 0, %s25
    %s42 = sphi 0, %s26
    %s46 = sphi 0, %s46
    %s48 = sphi 0, %s46
    %s49 = sphi 0, %s48
    %s63 = sphi 0, %s49
    %s67 = sphi 0, %s67
    %s69 = sphi 0, %s67
    %s70 = sphi 0, %s69
    %s84 = sphi 0, %s70
    %s88 = sphi 0, %s88
    %s90 = sphi 0, %s88
    %s91 = sphi 0, %s90
    %s105 = sphi 0, %s91
    %s111 = sphi 0, %s113
    %s114 = sphi 0, %s111
    %s115 = sphi 0, %s114
    %s131 = sphi 0, %s115
    %s137 = sphi 0, %s139
    %s140 = sphi 0, %s137
    %s141 = sphi 0, %s140
    %s157 = sphi 0, %s141
  $region4: #{encoder_block_forward.1} parent=0 // loop_header_branch
    %15 = sbr.rel (%p13) target = $region8
  $region5: #{encoder_block_forward.1} parent=0 // loop_body
    %s17 = ssub.s32 %s12, 1
    %s18 = ssub.s32 %s12, 2
    %s19 = sadd.s32 %s12, 1
    %s20 = ssub.s32 %s12, %s19
    %p21 = scmp.eq.s32.totalorder %s20, 0
    %s23 = sadd.s32 %s22, 1
    %s24 = scalar_select %p21, %s22, %s23
    %p27 = pneg %p21
    %p28 = scmp.eq.s32.totalorder %s12, 1
    %p29 = por %p27, %p28
    %p30 = scmp.ne.s32.totalorder %s22, %s25
    %p31 = scmp.eq.s32.totalorder %s12, 0
    %p32 = por %p30, %p31
    %p33 = scmp.ne.s32.totalorder %s22, %s25
    %p34 = scmp.eq.s32.totalorder %s17, 1
    %p35 = por %p33, %p34
    %p36 = scmp.ne.s32.totalorder %s25, %s26
    %p37 = scmp.eq.s32.totalorder %s17, 0
    %p38 = por %p36, %p37
    %p39 = scmp.ne.s32.totalorder %s25, %s26
    %p40 = scmp.eq.s32.totalorder %s18, 1
    %p41 = por %p39, %p40
    %p43 = scmp.ne.s32.totalorder %s26, %s42
    %p44 = scmp.eq.s32.totalorder %s18, 0
    %p45 = por %p43, %p44
    %s47 = sadd.s32 %s46, 1
    %p50 = scmp.eq.s32.totalorder %s12, 1
    %p51 = scmp.ne.s32.totalorder %s46, %s48
    %p52 = scmp.eq.s32.totalorder %s12, 0
    %p53 = por %p51, %p52
    %p54 = scmp.ne.s32.totalorder %s46, %s48
    %p55 = scmp.eq.s32.totalorder %s17, 1
    %p56 = por %p54, %p55
    %p57 = scmp.ne.s32.totalorder %s48, %s49
    %p58 = scmp.eq.s32.totalorder %s17, 0
    %p59 = por %p57, %p58
    %p60 = scmp.ne.s32.totalorder %s48, %s49
    %p61 = scmp.eq.s32.totalorder %s18, 1
    %p62 = por %p60, %p61
    %p64 = scmp.ne.s32.totalorder %s49, %s63
    %p65 = scmp.eq.s32.totalorder %s18, 0
    %p66 = por %p64, %p65
    %s68 = sadd.s32 %s67, 1
    %p71 = scmp.eq.s32.totalorder %s12, 1
    %p72 = scmp.ne.s32.totalorder %s67, %s69
    %p73 = scmp.eq.s32.totalorder %s12, 0
    %p74 = por %p72, %p73
    %p75 = scmp.ne.s32.totalorder %s67, %s69
    %p76 = scmp.eq.s32.totalorder %s17, 1
    %p77 = por %p75, %p76
    %p78 = scmp.ne.s32.totalorder %s69, %s70
    %p79 = scmp.eq.s32.totalorder %s17, 0
    %p80 = por %p78, %p79
    %p81 = scmp.ne.s32.totalorder %s69, %s70
    %p82 = scmp.eq.s32.totalorder %s18, 1
    %p83 = por %p81, %p82
    %p85 = scmp.ne.s32.totalorder %s70, %s84
    %p86 = scmp.eq.s32.totalorder %s18, 0
    %p87 = por %p85, %p86
    %s89 = sadd.s32 %s88, 1
    %p92 = scmp.eq.s32.totalorder %s12, 1
    %p93 = scmp.ne.s32.totalorder %s88, %s90
    %p94 = scmp.eq.s32.totalorder %s12, 0
    %p95 = por %p93, %p94
    %p96 = scmp.ne.s32.totalorder %s88, %s90
    %p97 = scmp.eq.s32.totalorder %s17, 1
    %p98 = por %p96, %p97
    %p99 = scmp.ne.s32.totalorder %s90, %s91
    %p100 = scmp.eq.s32.totalorder %s17, 0
    %p101 = por %p99, %p100
    %p102 = scmp.ne.s32.totalorder %s90, %s91
    %p103 = scmp.eq.s32.totalorder %s18, 1
    %p104 = por %p102, %p103
    %p106 = scmp.ne.s32.totalorder %s91, %s105
    %p107 = scmp.eq.s32.totalorder %s18, 0
    %p108 = por %p106, %p107
    %s109 = ssub.s32 %s12, %s19
    %p110 = scmp.eq.s32.totalorder %s109, 0
    %s112 = sadd.s32 %s111, 1
    %s113 = scalar_select %p110, %s111, %s112
    %p116 = pneg %p110
    %p117 = scmp.eq.s32.totalorder %s12, 1
    %p118 = por %p116, %p117
    %p119 = scmp.ne.s32.totalorder %s111, %s114
    %p120 = scmp.eq.s32.totalorder %s12, 0
    %p121 = por %p119, %p120
    %p122 = scmp.ne.s32.totalorder %s111, %s114
    %p123 = scmp.eq.s32.totalorder %s17, 1
    %p124 = por %p122, %p123
    %p125 = scmp.ne.s32.totalorder %s114, %s115
    %p126 = scmp.eq.s32.totalorder %s17, 0
    %p127 = por %p125, %p126
    %p128 = scmp.ne.s32.totalorder %s114, %s115
    %p129 = scmp.eq.s32.totalorder %s18, 1
    %p130 = por %p128, %p129
    %p132 = scmp.ne.s32.totalorder %s115, %s131
    %p133 = scmp.eq.s32.totalorder %s18, 0
    %p134 = por %p132, %p133
    %s135 = ssub.s32 %s12, %s19
    %p136 = scmp.eq.s32.totalorder %s135, 0
    %s138 = sadd.s32 %s137, 1
    %s139 = scalar_select %p136, %s137, %s138
    %p142 = pneg %p136
    %p143 = scmp.eq.s32.totalorder %s12, 1
    %p144 = por %p142, %p143
    %p145 = scmp.ne.s32.totalorder %s137, %s140
    %p146 = scmp.eq.s32.totalorder %s12, 0
    %p147 = por %p145, %p146
    %p148 = scmp.ne.s32.totalorder %s137, %s140
    %p149 = scmp.eq.s32.totalorder %s17, 1
    %p150 = por %p148, %p149
    %p151 = scmp.ne.s32.totalorder %s140, %s141
    %p152 = scmp.eq.s32.totalorder %s17, 0
    %p153 = por %p151, %p152
    %p154 = scmp.ne.s32.totalorder %s140, %s141
    %p155 = scmp.eq.s32.totalorder %s18, 1
    %p156 = por %p154, %p155
    %p158 = scmp.ne.s32.totalorder %s141, %s157
    %p159 = scmp.eq.s32.totalorder %s18, 0
    %p160 = por %p158, %p159
    %p161 = scmp.le.s32.totalorder 1, %s12
    %p162 = scmp.lt.s32.totalorder %s12, 3
    %p163 = pnand %p161, %p162
    %p164 = pneg %p163
    // Predicated region
    $region9: #{encoder_block_forward.1} parent=5 // pred_check
      _
    $region10: #{encoder_block_forward.1} parent=5 // pred_check_branch
      %166 = sbr.rel (%p163) target = $region12
    $region11: #{encoder_block_forward.1} parent=5 // pred_region
      %s167 = ssub.s32 %s12, 1
      // Predicated region
      $region13: #{encoder_block_forward.1} parent=11 // pred_check
        %p168 = pneg %p59
      $region14: #{encoder_block_forward.1} parent=11 // pred_check_branch
        %170 = sbr.rel (%p168) target = $region16
      $region15: #{encoder_block_forward.1} parent=11 // pred_region
        _
      $region16: #{encoder_block_forward.1} parent=11 // pred_fallthru
        _
      // Predicated region
      $region17: #{encoder_block_forward.1} parent=11 // pred_check
        %p171 = pneg %p80
      $region18: #{encoder_block_forward.1} parent=11 // pred_check_branch
        %173 = sbr.rel (%p171) target = $region20
      $region19: #{encoder_block_forward.1} parent=11 // pred_region
        _
      $region20: #{encoder_block_forward.1} parent=11 // pred_fallthru
        _
      // Predicated region
      $region21: #{encoder_block_forward.1} parent=11 // pred_check
        %p174 = pneg %p101
      $region22: #{encoder_block_forward.1} parent=11 // pred_check_branch
        %176 = sbr.rel (%p174) target = $region24
      $region23: #{encoder_block_forward.1} parent=11 // pred_region
        _
      $region24: #{encoder_block_forward.1} parent=11 // pred_fallthru
        _
    $region12: #{encoder_block_forward.1} parent=5 // pred_fallthru
      _
    %p177 = scmp.lt.s32.totalorder %s12, 2
    // Predicated region
    $region25: #{encoder_block_forward.1} parent=5 // pred_check
      %p178 = pneg %p177
    $region26: #{encoder_block_forward.1} parent=5 // pred_check_branch
      %180 = sbr.rel (%p178) target = $region28
    $region27: #{encoder_block_forward.1} parent=5 // pred_region
      // Predicated region
      $region29: #{encoder_block_forward.1} parent=27 // pred_check
        %p181 = pneg %p32
      $region30: #{encoder_block_forward.1} parent=27 // pred_check_branch
        %183 = sbr.rel (%p181) target = $region32
      $region31: #{encoder_block_forward.1} parent=27 // pred_region
        %s184 = smul.u32 2, %s12
        %p185 = scmp.lt.s32.totalorder %s184, 3
        %s186 = scalar_select %p185, %s184, 3
        %s187 = smul.addr %s186, 8
        %s188 = scalar_lea.vmem %s0, %s187
        %s189 = smul.u32 2, %s12
      $region32: #{encoder_block_forward.1} parent=27 // pred_fallthru
        _
    $region28: #{encoder_block_forward.1} parent=5 // pred_fallthru
      _
    %p190 = scmp.le.s32.totalorder 1, %s12
    %p191 = scmp.lt.s32.totalorder %s12, 3
    %p192 = pnand %p190, %p191
    %p193 = pneg %p192
    // Predicated region
    $region33: #{encoder_block_forward.1} parent=5 // pred_check
      _
    $region34: #{encoder_block_forward.1} parent=5 // pred_check_branch
      %195 = sbr.rel (%p192) target = $region36
    $region35: #{encoder_block_forward.1} parent=5 // pred_region
      %s196 = ssub.s32 %s12, 1
      %s197 = smul.u32 2, %s17
      %p198 = scmp.lt.s32.totalorder %s197, 3
      %s199 = scalar_select %p198, %s197, 3
      %s200 = smul.addr %s199, 8
      %s201 = scalar_lea.vmem %s0, %s200
      %p202 = pneg %p38
      %p203 = pneg %p35
      %p204 = pneg %p59
      %p205 = pneg %p56
      %p206 = pneg %p80
      %p207 = pneg %p77
      %p208 = pneg %p101
      %p209 = pneg %p98
      %p210 = pneg %p127
      %p211 = pneg %p124
      %s212 = smul.u32 2, %s17
      %p213 = scmp.lt.s32.totalorder %s212, 3
      %s214 = scalar_select %p213, %s212, 3
      %s215 = smul.addr %s214, 8
      %s216 = scalar_lea.vmem %s4, %s215
      %p217 = pneg %p153
      %p218 = pneg %p150
      %p219 = scmp.lt.s32.totalorder %s17, 1
      %s220 = scalar_select %p219, %s17, 1
      %s221 = smul.addr %s220, 8
      %s222 = scalar_lea.vmem %s5, %s221
      %s223 = smul.u32 2, %s17
      %p224 = scmp.lt.s32.totalorder %s223, 3
      %s225 = scalar_select %p224, %s223, 3
      %s226 = smul.addr %s225, 8
      %s227 = scalar_lea.vmem %s0, %s226
      %s228 = smul.u32 2, %s17
      %s229 = smul.u32 2, %s17
      %p230 = scmp.lt.s32.totalorder %s229, 3
      %s231 = scalar_select %p230, %s229, 3
      %s232 = smul.addr %s231, 8
      %s233 = scalar_lea.vmem %s4, %s232
      %s234 = smul.u32 2, %s17
      %p235 = scmp.lt.s32.totalorder %s17, 1
      %s236 = scalar_select %p235, %s17, 1
      %s237 = smul.addr %s236, 8
      %s238 = scalar_lea.vmem %s5, %s237
      %239 = vst [vmem:[#allocation2] sm:$0xff] 0.0
      %240 = vst [vmem:[#allocation2 + $0x8] sm:$0xff] 0.0
      %241 = vst [vmem:[#allocation2 + $0x10] sm:$0xff] 0.0
      %242 = vst [vmem:[#allocation2 + $0x18] sm:$0xff] 0.0
      %v243 = vld [vmem:[%s227] sm:$0xff]
      %v244 = vld [vmem:[%s227 + $0x8] sm:$0xff]
      %245 = vst [vmem:[#allocation2 + $0x8] sm:$0xff] %v243
      %246 = vst [vmem:[#allocation2 + $0x10] sm:$0xff] %v244
      %v247 = vld [vmem:[#allocation2 + $0x7] sm:$0xff]
      %v248 = vld [vmem:[#allocation2 + $0xf] sm:$0xff]
      %v249 = vld [vmem:[#allocation2 + $0x9] sm:$0xff]
      %v250 = vld [vmem:[#allocation2 + $0x11] sm:$0xff]
      %v251 = vpack.c.bf16 %v248, %v247
      %v252 = vpack.c.bf16 %v244, %v243
      %v253 = vpack.c.bf16 %v250, %v249
      %v254 = vld [vmem:[%s1] sm:$0xf]
      %v255 = vld [vmem:[%s1 + $0x4] sm:$0xf]
      %v256 = vld [vmem:[%s1 + $0x8] sm:$0xf]
      %v257 = vld [vmem:[%s1 + $0xc] sm:$0xf]
      %v258 = vld [vmem:[%s1 + $0x10] sm:$0xf]
      %v259 = vld [vmem:[%s1 + $0x14] sm:$0xf]
      %v260 = vld [vmem:[%s1 + $0x18] sm:$0xf]
      %v261 = vld [vmem:[%s1 + $0x1c] sm:$0xf]
      %v262 = vld [vmem:[%s1 + $0x20] sm:$0xf]
      %v263 = vld [vmem:[%s1 + $0x24] sm:$0xf]
      %v264 = vld [vmem:[%s1 + $0x28] sm:$0xf]
      %v265 = vld [vmem:[%s1 + $0x2c] sm:$0xf]
      %v266 = vld [vmem:[%s1 + $0x30] sm:$0xf]
      %v267 = vld [vmem:[%s1 + $0x34] sm:$0xf]
      %v268 = vld [vmem:[%s1 + $0x38] sm:$0xf]
      %v269 = vld [vmem:[%s1 + $0x3c] sm:$0xf]
      %v270 = vld [vmem:[%s1 + $0x40] sm:$0xf]
      %v271 = vld [vmem:[%s1 + $0x44] sm:$0xf]
      %v272 = vld [vmem:[%s1 + $0x48] sm:$0xf]
      %v273 = vld [vmem:[%s1 + $0x4c] sm:$0xf]
      %v274 = vld [vmem:[%s1 + $0x50] sm:$0xf]
      %v275 = vld [vmem:[%s1 + $0x54] sm:$0xf]
      %v276 = vld [vmem:[%s1 + $0x58] sm:$0xf]
      %v277 = vld [vmem:[%s1 + $0x5c] sm:$0xf]
      %v278 = vld [vmem:[%s1 + $0x60] sm:$0xf]
      %v279 = vld [vmem:[%s1 + $0x64] sm:$0xf]
      %v280 = vld [vmem:[%s1 + $0x68] sm:$0xf]
      %v281 = vld [vmem:[%s1 + $0x6c] sm:$0xf]
      %v282 = vld [vmem:[%s1 + $0x70] sm:$0xf]
      %v283 = vld [vmem:[%s1 + $0x74] sm:$0xf]
      %v284 = vld [vmem:[%s1 + $0x78] sm:$0xf]
      %v285 = vld [vmem:[%s1 + $0x7c] sm:$0xf]
      %v286 = vld [vmem:[%s1 + $0x80] sm:$0xf]
      %v287 = vld [vmem:[%s1 + $0x84] sm:$0xf]
      %v288 = vld [vmem:[%s1 + $0x88] sm:$0xf]
      %v289 = vld [vmem:[%s1 + $0x8c] sm:$0xf]
      %v290 = vld [vmem:[%s1 + $0x90] sm:$0xf]
      %v291 = vld [vmem:[%s1 + $0x94] sm:$0xf]
      %v292 = vld [vmem:[%s1 + $0x98] sm:$0xf]
      %v293 = vld [vmem:[%s1 + $0x9c] sm:$0xf]
      %v294 = vld [vmem:[%s1 + $0xa0] sm:$0xf]
      %v295 = vld [vmem:[%s1 + $0xa4] sm:$0xf]
      %v296 = vld [vmem:[%s1 + $0xa8] sm:$0xf]
      %v297 = vld [vmem:[%s1 + $0xac] sm:$0xf]
      %v298 = vld [vmem:[%s1 + $0xb0] sm:$0xf]
      %v299 = vld [vmem:[%s1 + $0xb4] sm:$0xf]
      %v300 = vld [vmem:[%s1 + $0xb8] sm:$0xf]
      %v301 = vld [vmem:[%s1 + $0xbc] sm:$0xf]
      %v302 = vld [vmem:[%s2] sm:$0x7]
      %v303 = vperm.slane %v302, 0
      %v352 = vunpack.c.l.b16 %v254
      %v353 = vunpack.c.l.b16 %v255
      %v354 = vunpack.c.l.b16 %v256
      %v355 = vunpack.c.l.b16 %v257
      %v356 = vunpack.c.l.b16 %v258
      %v357 = vunpack.c.l.b16 %v259
      %v358 = vunpack.c.l.b16 %v260
      %v359 = vunpack.c.l.b16 %v261
      %v360 = vunpack.c.l.b16 %v262
      %v361 = vunpack.c.l.b16 %v263
      %v362 = vunpack.c.l.b16 %v264
      %v363 = vunpack.c.l.b16 %v265
      %v364 = vunpack.c.l.b16 %v266
      %v365 = vunpack.c.l.b16 %v267
      %v366 = vunpack.c.l.b16 %v268
      %v367 = vunpack.c.l.b16 %v269
      %v368 = vunpack.c.l.b16 %v270
      %v369 = vunpack.c.l.b16 %v271
      %v370 = vunpack.c.l.b16 %v272
      %v371 = vunpack.c.l.b16 %v273
      %v372 = vunpack.c.l.b16 %v274
      %v373 = vunpack.c.l.b16 %v275
      %v374 = vunpack.c.l.b16 %v276
      %v375 = vunpack.c.l.b16 %v277
      %v376 = vunpack.c.l.b16 %v278
      %v377 = vunpack.c.l.b16 %v279
      %v378 = vunpack.c.l.b16 %v280
      %v379 = vunpack.c.l.b16 %v281
      %v380 = vunpack.c.l.b16 %v282
      %v381 = vunpack.c.l.b16 %v283
      %v382 = vunpack.c.l.b16 %v284
      %v383 = vunpack.c.l.b16 %v285
      %v384 = vunpack.c.l.b16 %v286
      %v385 = vunpack.c.l.b16 %v287
      %v386 = vunpack.c.l.b16 %v288
      %v387 = vunpack.c.l.b16 %v289
      %v388 = vunpack.c.l.b16 %v290
      %v389 = vunpack.c.l.b16 %v291
      %v390 = vunpack.c.l.b16 %v292
      %v391 = vunpack.c.l.b16 %v293
      %v392 = vunpack.c.l.b16 %v294
      %v393 = vunpack.c.l.b16 %v295
      %v394 = vunpack.c.l.b16 %v296
      %v395 = vunpack.c.l.b16 %v297
      %v396 = vunpack.c.l.b16 %v298
      %v397 = vunpack.c.l.b16 %v299
      %v398 = vunpack.c.l.b16 %v300
      %v399 = vunpack.c.l.b16 %v301
      %v400 = vpack.c.b16 %v353, %v352
      %v401 = vpack.c.b16 %v355, %v354
      %v402 = vpack.c.b16 %v357, %v356
      %v403 = vpack.c.b16 %v359, %v358
      %v404 = vpack.c.b16 %v361, %v360
      %v405 = vpack.c.b16 %v363, %v362
      %v406 = vpack.c.b16 %v365, %v364
      %v407 = vpack.c.b16 %v367, %v366
      %v408 = vpack.c.b16 %v369, %v368
      %v409 = vpack.c.b16 %v371, %v370
      %v410 = vpack.c.b16 %v373, %v372
      %v411 = vpack.c.b16 %v375, %v374
      %v412 = vpack.c.b16 %v377, %v376
      %v413 = vpack.c.b16 %v379, %v378
      %v414 = vpack.c.b16 %v381, %v380
      %v415 = vpack.c.b16 %v383, %v382
      %v416 = vpack.c.b16 %v385, %v384
      %v417 = vpack.c.b16 %v387, %v386
      %v418 = vpack.c.b16 %v389, %v388
      %v419 = vpack.c.b16 %v391, %v390
      %v420 = vpack.c.b16 %v393, %v392
      %v421 = vpack.c.b16 %v395, %v394
      %v422 = vpack.c.b16 %v397, %v396
      %v423 = vpack.c.b16 %v399, %v398
      %448 = vmatpush.bf16.msra.mxu0 %v407
      %449 = vmatpush.bf16.msra.mxu0 %v406
      %450 = vmatpush.bf16.msra.mxu0 %v405
      %451 = vmatpush.bf16.msra.mxu0 %v404
      %452 = vmatpush.bf16.msra.mxu0 %v403
      %453 = vmatpush.bf16.msra.mxu0 %v402
      %454 = vmatpush.bf16.msra.mxu0 %v401
      %455 = vmatpush.bf16.msra.mxu0 %v400
      %456 = vmatmul.bf16.gmra.mxu0 %v251
      %v457 = vpop.f32.mrf.mxu0
      %v458 = vadd.f32 %v303, %v457
      %v459 = vpop.f32.mrf.mxu0
      %v460 = vadd.f32 %v303, %v459
      %461 = vdwg.mxu0
      %462 = vmatpush.bf16.msra.mxu0 %v415
      %463 = vmatpush.bf16.msra.mxu0 %v414
      %464 = vmatpush.bf16.msra.mxu0 %v413
      %465 = vmatpush.bf16.msra.mxu0 %v412
      %466 = vmatpush.bf16.msra.mxu0 %v411
      %467 = vmatpush.bf16.msra.mxu0 %v410
      %468 = vmatpush.bf16.msra.mxu0 %v409
      %469 = vmatpush.bf16.msra.mxu0 %v408
      %470 = vmatmul.bf16.gmra.mxu0 %v252
      %v471 = vpop.f32.mrf.mxu0
      %v472 = vadd.f32 %v458, %v471
      %v473 = vpop.f32.mrf.mxu0
      %v474 = vadd.f32 %v460, %v473
      %475 = vdwg.mxu0
      %476 = vmatpush.bf16.msra.mxu0 %v423
      %477 = vmatpush.bf16.msra.mxu0 %v422
      %478 = vmatpush.bf16.msra.mxu0 %v421
      %479 = vmatpush.bf16.msra.mxu0 %v420
      %480 = vmatpush.bf16.msra.mxu0 %v419
      %481 = vmatpush.bf16.msra.mxu0 %v418
      %482 = vmatpush.bf16.msra.mxu0 %v417
      %483 = vmatpush.bf16.msra.mxu0 %v416
      %484 = vmatmul.bf16.gmra.mxu0 %v253
      %v485 = vpop.f32.mrf.mxu0
      %v486 = vadd.f32 %v472, %v485
      %v487 = vpop.f32.mrf.mxu0
      %v488 = vadd.f32 %v474, %v487
      %489 = vdwg.mxu0
      %vm490 = vcmp.gt.f32.partialorder %v486, 0.0
      %vm491 = vcmp.gt.f32.partialorder %v488, 0.0
      %v492 = vmul.f32 %v486, 0.01
      %v493 = vmul.f32 %v488, 0.01
      %v494 = vsel %vm490, %v486, %v492
      %v495 = vsel %vm491, %v488, %v493
      %v496 = vperm.slane %v302, 1
      %v497 = vmul.f32 %v494, %v496
      %v498 = vmul.f32 %v495, %v496
      %v499 = vperm.slane %v302, 2
      %v500 = vadd.f32 %v497, %v499
      %v501 = vadd.f32 %v498, %v499
      %502 = vst [vmem:[#allocation2 + $0x8] sm:$0xff] %v500
      %503 = vst [vmem:[#allocation2 + $0x10] sm:$0xff] %v501
      %v504 = vld [vmem:[#allocation2 + $0x7] sm:$0xff]
      %v505 = vld [vmem:[#allocation2 + $0xf] sm:$0xff]
      %v506 = vld [vmem:[#allocation2 + $0x9] sm:$0xff]
      %v507 = vld [vmem:[#allocation2 + $0x11] sm:$0xff]
      %v508 = vpack.c.bf16 %v505, %v504
      %v509 = vpack.c.bf16 %v501, %v500
      %v510 = vpack.c.bf16 %v507, %v506
      %s511 = scalar_lea.vmem %s1, 192
      %v512 = vld [vmem:[%s511] sm:$0xf]
      %v513 = vld [vmem:[%s511 + $0x4] sm:$0xf]
      %v514 = vld [vmem:[%s511 + $0x8] sm:$0xf]
      %v515 = vld [vmem:[%s511 + $0xc] sm:$0xf]
      %v516 = vld [vmem:[%s511 + $0x10] sm:$0xf]
      %v517 = vld [vmem:[%s511 + $0x14] sm:$0xf]
      %v518 = vld [vmem:[%s511 + $0x18] sm:$0xf]
      %v519 = vld [vmem:[%s511 + $0x1c] sm:$0xf]
      %v520 = vld [vmem:[%s511 + $0x20] sm:$0xf]
      %v521 = vld [vmem:[%s511 + $0x24] sm:$0xf]
      %v522 = vld [vmem:[%s511 + $0x28] sm:$0xf]
      %v523 = vld [vmem:[%s511 + $0x2c] sm:$0xf]
      %v524 = vld [vmem:[%s511 + $0x30] sm:$0xf]
      %v525 = vld [vmem:[%s511 + $0x34] sm:$0xf]
      %v526 = vld [vmem:[%s511 + $0x38] sm:$0xf]
      %v527 = vld [vmem:[%s511 + $0x3c] sm:$0xf]
      %v528 = vld [vmem:[%s511 + $0x40] sm:$0xf]
      %v529 = vld [vmem:[%s511 + $0x44] sm:$0xf]
      %v530 = vld [vmem:[%s511 + $0x48] sm:$0xf]
      %v531 = vld [vmem:[%s511 + $0x4c] sm:$0xf]
      %v532 = vld [vmem:[%s511 + $0x50] sm:$0xf]
      %v533 = vld [vmem:[%s511 + $0x54] sm:$0xf]
      %v534 = vld [vmem:[%s511 + $0x58] sm:$0xf]
      %v535 = vld [vmem:[%s511 + $0x5c] sm:$0xf]
      %v536 = vld [vmem:[%s511 + $0x60] sm:$0xf]
      %v537 = vld [vmem:[%s511 + $0x64] sm:$0xf]
      %v538 = vld [vmem:[%s511 + $0x68] sm:$0xf]
      %v539 = vld [vmem:[%s511 + $0x6c] sm:$0xf]
      %v540 = vld [vmem:[%s511 + $0x70] sm:$0xf]
      %v541 = vld [vmem:[%s511 + $0x74] sm:$0xf]
      %v542 = vld [vmem:[%s511 + $0x78] sm:$0xf]
      %v543 = vld [vmem:[%s511 + $0x7c] sm:$0xf]
      %v544 = vld [vmem:[%s511 + $0x80] sm:$0xf]
      %v545 = vld [vmem:[%s511 + $0x84] sm:$0xf]
      %v546 = vld [vmem:[%s511 + $0x88] sm:$0xf]
      %v547 = vld [vmem:[%s511 + $0x8c] sm:$0xf]
      %v548 = vld [vmem:[%s511 + $0x90] sm:$0xf]
      %v549 = vld [vmem:[%s511 + $0x94] sm:$0xf]
      %v550 = vld [vmem:[%s511 + $0x98] sm:$0xf]
      %v551 = vld [vmem:[%s511 + $0x9c] sm:$0xf]
      %v552 = vld [vmem:[%s511 + $0xa0] sm:$0xf]
      %v553 = vld [vmem:[%s511 + $0xa4] sm:$0xf]
      %v554 = vld [vmem:[%s511 + $0xa8] sm:$0xf]
      %v555 = vld [vmem:[%s511 + $0xac] sm:$0xf]
      %v556 = vld [vmem:[%s511 + $0xb0] sm:$0xf]
      %v557 = vld [vmem:[%s511 + $0xb4] sm:$0xf]
      %v558 = vld [vmem:[%s511 + $0xb8] sm:$0xf]
      %v559 = vld [vmem:[%s511 + $0xbc] sm:$0xf]
      %s560 = scalar_lea.vmem %s2, 4
      %v561 = vld [vmem:[%s560] sm:$0x7]
      %v562 = vperm.slane %v561, 0
      %v611 = vunpack.c.l.b16 %v512
      %v612 = vunpack.c.l.b16 %v513
      %v613 = vunpack.c.l.b16 %v514
      %v614 = vunpack.c.l.b16 %v515
      %v615 = vunpack.c.l.b16 %v516
      %v616 = vunpack.c.l.b16 %v517
      %v617 = vunpack.c.l.b16 %v518
      %v618 = vunpack.c.l.b16 %v519
      %v619 = vunpack.c.l.b16 %v520
      %v620 = vunpack.c.l.b16 %v521
      %v621 = vunpack.c.l.b16 %v522
      %v622 = vunpack.c.l.b16 %v523
      %v623 = vunpack.c.l.b16 %v524
      %v624 = vunpack.c.l.b16 %v525
      %v625 = vunpack.c.l.b16 %v526
      %v626 = vunpack.c.l.b16 %v527
      %v627 = vunpack.c.l.b16 %v528
      %v628 = vunpack.c.l.b16 %v529
      %v629 = vunpack.c.l.b16 %v530
      %v630 = vunpack.c.l.b16 %v531
      %v631 = vunpack.c.l.b16 %v532
      %v632 = vunpack.c.l.b16 %v533
      %v633 = vunpack.c.l.b16 %v534
      %v634 = vunpack.c.l.b16 %v535
      %v635 = vunpack.c.l.b16 %v536
      %v636 = vunpack.c.l.b16 %v537
      %v637 = vunpack.c.l.b16 %v538
      %v638 = vunpack.c.l.b16 %v539
      %v639 = vunpack.c.l.b16 %v540
      %v640 = vunpack.c.l.b16 %v541
      %v641 = vunpack.c.l.b16 %v542
      %v642 = vunpack.c.l.b16 %v543
      %v643 = vunpack.c.l.b16 %v544
      %v644 = vunpack.c.l.b16 %v545
      %v645 = vunpack.c.l.b16 %v546
      %v646 = vunpack.c.l.b16 %v547
      %v647 = vunpack.c.l.b16 %v548
      %v648 = vunpack.c.l.b16 %v549
      %v649 = vunpack.c.l.b16 %v550
      %v650 = vunpack.c.l.b16 %v551
      %v651 = vunpack.c.l.b16 %v552
      %v652 = vunpack.c.l.b16 %v553
      %v653 = vunpack.c.l.b16 %v554
      %v654 = vunpack.c.l.b16 %v555
      %v655 = vunpack.c.l.b16 %v556
      %v656 = vunpack.c.l.b16 %v557
      %v657 = vunpack.c.l.b16 %v558
      %v658 = vunpack.c.l.b16 %v559
      %v659 = vpack.c.b16 %v612, %v611
      %v660 = vpack.c.b16 %v614, %v613
      %v661 = vpack.c.b16 %v616, %v615
      %v662 = vpack.c.b16 %v618, %v617
      %v663 = vpack.c.b16 %v620, %v619
      %v664 = vpack.c.b16 %v622, %v621
      %v665 = vpack.c.b16 %v624, %v623
      %v666 = vpack.c.b16 %v626, %v625
      %v667 = vpack.c.b16 %v628, %v627
      %v668 = vpack.c.b16 %v630, %v629
      %v669 = vpack.c.b16 %v632, %v631
      %v670 = vpack.c.b16 %v634, %v633
      %v671 = vpack.c.b16 %v636, %v635
      %v672 = vpack.c.b16 %v638, %v637
      %v673 = vpack.c.b16 %v640, %v639
      %v674 = vpack.c.b16 %v642, %v641
      %v675 = vpack.c.b16 %v644, %v643
      %v676 = vpack.c.b16 %v646, %v645
      %v677 = vpack.c.b16 %v648, %v647
      %v678 = vpack.c.b16 %v650, %v649
      %v679 = vpack.c.b16 %v652, %v651
      %v680 = vpack.c.b16 %v654, %v653
      %v681 = vpack.c.b16 %v656, %v655
      %v682 = vpack.c.b16 %v658, %v657
      %707 = vmatpush.bf16.msra.mxu0 %v666
      %708 = vmatpush.bf16.msra.mxu0 %v665
      %709 = vmatpush.bf16.msra.mxu0 %v664
      %710 = vmatpush.bf16.msra.mxu0 %v663
      %711 = vmatpush.bf16.msra.mxu0 %v662
      %712 = vmatpush.bf16.msra.mxu0 %v661
      %713 = vmatpush.bf16.msra.mxu0 %v660
      %714 = vmatpush.bf16.msra.mxu0 %v659
      %715 = vmatmul.bf16.gmra.mxu0 %v508
      %v716 = vpop.f32.mrf.mxu0
      %v717 = vadd.f32 %v562, %v716
      %v718 = vpop.f32.mrf.mxu0
      %v719 = vadd.f32 %v562, %v718
      %720 = vdwg.mxu0
      %721 = vmatpush.bf16.msra.mxu0 %v674
      %722 = vmatpush.bf16.msra.mxu0 %v673
      %723 = vmatpush.bf16.msra.mxu0 %v672
      %724 = vmatpush.bf16.msra.mxu0 %v671
      %725 = vmatpush.bf16.msra.mxu0 %v670
      %726 = vmatpush.bf16.msra.mxu0 %v669
      %727 = vmatpush.bf16.msra.mxu0 %v668
      %728 = vmatpush.bf16.msra.mxu0 %v667
      %729 = vmatmul.bf16.gmra.mxu0 %v509
      %v730 = vpop.f32.mrf.mxu0
      %v731 = vadd.f32 %v717, %v730
      %v732 = vpop.f32.mrf.mxu0
      %v733 = vadd.f32 %v719, %v732
      %734 = vdwg.mxu0
      %735 = vmatpush.bf16.msra.mxu0 %v682
      %736 = vmatpush.bf16.msra.mxu0 %v681
      %737 = vmatpush.bf16.msra.mxu0 %v680
      %738 = vmatpush.bf16.msra.mxu0 %v679
      %739 = vmatpush.bf16.msra.mxu0 %v678
      %740 = vmatpush.bf16.msra.mxu0 %v677
      %741 = vmatpush.bf16.msra.mxu0 %v676
      %742 = vmatpush.bf16.msra.mxu0 %v675
      %743 = vmatmul.bf16.gmra.mxu0 %v510
      %v744 = vpop.f32.mrf.mxu0
      %v745 = vadd.f32 %v731, %v744
      %v746 = vpop.f32.mrf.mxu0
      %v747 = vadd.f32 %v733, %v746
      %748 = vdwg.mxu0
      %vm749 = vcmp.gt.f32.partialorder %v745, 0.0
      %vm750 = vcmp.gt.f32.partialorder %v747, 0.0
      %v751 = vmul.f32 %v745, 0.01
      %v752 = vmul.f32 %v747, 0.01
      %v753 = vsel %vm749, %v745, %v751
      %v754 = vsel %vm750, %v747, %v752
      %v755 = vperm.slane %v561, 1
      %v756 = vmul.f32 %v753, %v755
      %v757 = vmul.f32 %v754, %v755
      %v758 = vperm.slane %v561, 2
      %v759 = vadd.f32 %v756, %v758
      %v760 = vadd.f32 %v757, %v758
      %761 = vst [vmem:[%s233] sm:$0xff] %v759
      %762 = vst [vmem:[%s233 + $0x8] sm:$0xff] %v760
      %v763 = vld [vmem:[%s233] ss:$2 sm:$0xff]
      %s764 = scalar_lea.vmem %s233, 1
      %v765 = vld [vmem:[%s764] ss:$2 sm:$0xff]
      %v766 = vadd.f32 %v763, %v765
      %v767 = vpack.c.bf16 %v766, %v766
      %v768 = vld [vmem:[%s3] sm:$0xf]
      %v769 = vld [vmem:[%s3 + $0x4] sm:$0xf]
      %v770 = vld [vmem:[%s3 + $0x8] sm:$0xf]
      %v771 = vld [vmem:[%s3 + $0xc] sm:$0xf]
      %v772 = vld [vmem:[%s3 + $0x10] sm:$0xf]
      %v773 = vld [vmem:[%s3 + $0x14] sm:$0xf]
      %v774 = vld [vmem:[%s3 + $0x18] sm:$0xf]
      %v775 = vld [vmem:[%s3 + $0x1c] sm:$0xf]
      %v776 = vld [vmem:[%s3 + $0x20] sm:$0xf]
      %v777 = vld [vmem:[%s3 + $0x24] sm:$0xf]
      %v778 = vld [vmem:[%s3 + $0x28] sm:$0xf]
      %v779 = vld [vmem:[%s3 + $0x2c] sm:$0xf]
      %v780 = vld [vmem:[%s3 + $0x30] sm:$0xf]
      %v781 = vld [vmem:[%s3 + $0x34] sm:$0xf]
      %v782 = vld [vmem:[%s3 + $0x38] sm:$0xf]
      %v783 = vld [vmem:[%s3 + $0x3c] sm:$0xf]
      %v800 = vunpack.c.l.b16 %v768
      %v801 = vunpack.c.l.b16 %v769
      %v802 = vunpack.c.l.b16 %v770
      %v803 = vunpack.c.l.b16 %v771
      %v804 = vunpack.c.l.b16 %v772
      %v805 = vunpack.c.l.b16 %v773
      %v806 = vunpack.c.l.b16 %v774
      %v807 = vunpack.c.l.b16 %v775
      %v808 = vunpack.c.l.b16 %v776
      %v809 = vunpack.c.l.b16 %v777
      %v810 = vunpack.c.l.b16 %v778
      %v811 = vunpack.c.l.b16 %v779
      %v812 = vunpack.c.l.b16 %v780
      %v813 = vunpack.c.l.b16 %v781
      %v814 = vunpack.c.l.b16 %v782
      %v815 = vunpack.c.l.b16 %v783
      %v816 = vpack.c.b16 %v801, %v800
      %v817 = vpack.c.b16 %v803, %v802
      %v818 = vpack.c.b16 %v805, %v804
      %v819 = vpack.c.b16 %v807, %v806
      %v820 = vpack.c.b16 %v809, %v808
      %v821 = vpack.c.b16 %v811, %v810
      %v822 = vpack.c.b16 %v813, %v812
      %v823 = vpack.c.b16 %v815, %v814
      %832 = vmatpush.bf16.msra.mxu0 %v823
      %833 = vmatpush.bf16.msra.mxu0 %v822
      %834 = vmatpush.bf16.msra.mxu0 %v821
      %835 = vmatpush.bf16.msra.mxu0 %v820
      %836 = vmatpush.bf16.msra.mxu0 %v819
      %837 = vmatpush.bf16.msra.mxu0 %v818
      %838 = vmatpush.bf16.msra.mxu0 %v817
      %839 = vmatpush.bf16.msra.mxu0 %v816
      %840 = vmatmul.bf16.gmra.mxu0 %v767
      %v841 = vpop.f32.mrf.mxu0
      %v842 = vadd.f32 0.0, %v841
      %v843 = vpop.f32.mrf.mxu0
      %844 = vdwg.mxu0
      %v845 = vmul.f32 %v842, 0.25
      %vm846 = vcmask 523264
      %847 = vst.msk [vmem:[%s238] sm:$0xff] %vm846, %v845
      %s848 = smul.u32 2, %s17
      %p849 = scmp.lt.s32.totalorder %s848, 3
      %s850 = scalar_select %p849, %s848, 3
      %s851 = smul.addr %s850, 8
      %s852 = scalar_lea.vmem %s4, %s851
      %p853 = scmp.lt.s32.totalorder %s17, 1
      %s854 = scalar_select %p853, %s17, 1
      %s855 = smul.addr %s854, 8
      %s856 = scalar_lea.vmem %s5, %s855
      // Predicated region
      $region37: #{encoder_block_forward.1} parent=35 // pred_check
        %p857 = pneg %p124
      $region38: #{encoder_block_forward.1} parent=35 // pred_check_branch
        %859 = sbr.rel (%p857) target = $region40
      $region39: #{encoder_block_forward.1} parent=35 // pred_region
        %s860 = smul.u32 2, %s17
      $region40: #{encoder_block_forward.1} parent=35 // pred_fallthru
        _
      // Predicated region
      $region41: #{encoder_block_forward.1} parent=35 // pred_check
        %p861 = pneg %p150
      $region42: #{encoder_block_forward.1} parent=35 // pred_check_branch
        %863 = sbr.rel (%p861) target = $region44
      $region43: #{encoder_block_forward.1} parent=35 // pred_region
        _
      $region44: #{encoder_block_forward.1} parent=35 // pred_fallthru
        _
    $region36: #{encoder_block_forward.1} parent=5 // pred_fallthru
      _
    %p864 = scmp.le.s32.totalorder 2, %s12
    // Predicated region
    $region45: #{encoder_block_forward.1} parent=5 // pred_check
      %p865 = pneg %p864
    $region46: #{encoder_block_forward.1} parent=5 // pred_check_branch
      %867 = sbr.rel (%p865) target = $region48
    $region47: #{encoder_block_forward.1} parent=5 // pred_region
      %s868 = ssub.s32 %s12, 2
      // Predicated region
      $region49: #{encoder_block_forward.1} parent=47 // pred_check
        %p869 = pneg %p130
      $region50: #{encoder_block_forward.1} parent=47 // pred_check_branch
        %871 = sbr.rel (%p869) target = $region52
      $region51: #{encoder_block_forward.1} parent=47 // pred_region
        %s872 = smul.u32 2, %s18
        %p873 = scmp.lt.s32.totalorder %s872, 3
        %s874 = scalar_select %p873, %s872, 3
        %s875 = smul.addr %s874, 8
        %s876 = scalar_lea.vmem %s4, %s875
      $region52: #{encoder_block_forward.1} parent=47 // pred_fallthru
        _
      // Predicated region
      $region53: #{encoder_block_forward.1} parent=47 // pred_check
        %p877 = pneg %p156
      $region54: #{encoder_block_forward.1} parent=47 // pred_check_branch
        %879 = sbr.rel (%p877) target = $region56
      $region55: #{encoder_block_forward.1} parent=47 // pred_region
        %p880 = scmp.lt.s32.totalorder %s18, 1
        %s881 = scalar_select %p880, %s18, 1
        %s882 = smul.addr %s881, 8
        %s883 = scalar_lea.vmem %s5, %s882
      $region56: #{encoder_block_forward.1} parent=47 // pred_fallthru
        _
    $region48: #{encoder_block_forward.1} parent=5 // pred_fallthru
      _
  $region6: #{encoder_block_forward.1} parent=0 // loop_footer
    %s16 = sadd.s32 1, %s12
  $region7: #{encoder_block_forward.1} parent=0 // loop_footer_branch
    %11 = sbr.rel target = $region3
  $region8: #{encoder_block_forward.1} parent=0 // loop_exit
    _

</llo_original>
